<compile_context>
chip_gen: v6e
topology: v6e:2x2x1
jax: 0.10.0
libtpu: 0.0.40
codegen_flags: <defaults>
</compile_context>

<pallas_src>
import jax
import jax.numpy as jnp
from jax.experimental import pallas as pl
from jax.experimental.pallas import tpu as pltpu


def _ffn_kernel(x_ref, w13_ref, w2_ref, o_ref, *acc):
    # x_ref   : (tm, D)        bf16   token tile (resident across the h axis)
    # w13_ref : (1, D, 2*th)   bf16   canonical gate||up slab for hidden tile h
    # w2_ref  : (th, D)        bf16   canonical down-proj rows for hidden tile h
    # o_ref   : (tm, D)        out dtype (resident across the h axis)
    # acc     : ()  for f32 outputs (accumulate into o_ref directly), or
    #           (acc_ref,) f32 VMEM scratch for non-f32 outputs.
    acc_ref = acc[0] if acc else o_ref
    h = pl.program_id(1)

    @pl.when(h == 0)
    def _init():
        acc_ref[...] = jnp.zeros_like(acc_ref)

    x = x_ref[...]                                   # (tm, D) bf16
    w13 = w13_ref[0]                                 # (D, 2*th) bf16
    th = w13.shape[1] // 2

    # Fused gate/up projection, canonical (M,K)x(K,N) -> f32 accumulation.
    h13 = jnp.dot(x, w13, preferred_element_type=jnp.float32)   # (tm, 2*th)
    h1 = h13[:, :th]
    h3 = h13[:, th:]

    # SiLU * up in f32 (v5e VPU/EUP have no bf16 path).
    g = (h1 * jax.nn.sigmoid(h1)) * h3               # (tm, th) f32

    # Down projection, canonical (tm,th)x(th,D), accumulated over hidden tiles.
    acc_ref[...] += jnp.dot(g.astype(w2_ref.dtype), w2_ref[...],
                            preferred_element_type=jnp.float32)

    if acc:  # trace-time branch: only needed when output dtype != f32
        @pl.when(h == pl.num_programs(1) - 1)
        def _finalize():
            o_ref[...] = acc_ref[...].astype(o_ref.dtype)


def prepare_ffn_weights(w1, w2, w3, *, th=512, compute_dtype=jnp.bfloat16):
    """One-time weight prep (model load time, NOT per forward call).

    w1, w3: (H, D) torch nn.Linear layout; w2: (D, H) torch layout.
    Returns:
      w13t: (H//th, D, 2*th)  per-hidden-tile contiguous, MXU-canonical slab;
            columns [:th] are w1 (gate), [th:] are w3 (up).
      w2t : (H, D)            w2 transposed: canonical, contiguous D-wide rows.
    """
    H, D = w1.shape
    assert w3.shape == (H, D) and w2.shape == (D, H)
    th = min(th, H)
    assert H % th == 0 and th % 128 == 0, "hidden tile must divide H and be a multiple of 128"
    n_h = H // th
    w1t = jnp.transpose(w1, (1, 0)).reshape(D, n_h, th)
    w3t = jnp.transpose(w3, (1, 0)).reshape(D, n_h, th)
    w13t = jnp.concatenate([w1t, w3t], axis=-1)                    # (D, n_h, 2*th)
    w13t = jnp.transpose(w13t, (1, 0, 2)).astype(compute_dtype)    # (n_h, D, 2*th)
    w2t = jnp.transpose(w2, (1, 0)).astype(compute_dtype)          # (H, D)
    return w13t, w2t


def _round_up(v, m):
    return ((v + m - 1) // m) * m


def _vmem_budget_bytes():
    """Chip VMEM capacity minus headroom for Mosaic internal scratch/semaphores."""
    try:
        info = pltpu.get_tpu_info()
        cap = int(getattr(info, "vmem_capacity_bytes", 64 * 1024 * 1024))
    except Exception:
        cap = 64 * 1024 * 1024
    return max(cap - 12 * 1024 * 1024, 32 * 1024 * 1024)


def _pick_tm(M, D, th, out_itemsize, vmem_budget, tm_max=None):
    if tm_max is None:
        # v5e/v6e (128 MiB VMEM) afford ~1024-row token tiles; v7x (64 MiB) ~512.
        tm_max = 1024 if vmem_budget >= 96 * 1024 * 1024 else 512
    # Shrink until double-buffered x/out blocks (+ f32 acc worst case) and the
    # double-buffered weight tiles fit the VMEM budget.
    weight_bytes = 2 * (D * 2 * th * 2) + 2 * (th * D * 2)        # bf16, 2 buffers each
    per_row = D * (2 * 2 + 2 * out_itemsize + 4)
    tm = tm_max
    while tm > 16 and weight_bytes + tm * per_row + (2 << 20) > vmem_budget:
        tm //= 2
    # Decode-shaped calls: don't pad a handful of tokens up to a huge tile.
    tm = min(tm, max(16, _round_up(M, 16)))
    # v7x megacore: the token axis is the only "parallel" axis; keep >=2 tiles
    # when there are enough rows so neither TensorCore idles.
    if M > 16 and pl.cdiv(M, tm) < 2:
        tm = max(16, _round_up(pl.cdiv(M, 2), 16))
    return tm


def feed_forward(x, w13t, w2t, *, tm=None):
    """SwiGLU FFN forward.  x: (B, S, D); w13t: (H//th, D, 2*th); w2t: (H, D)."""
    B, S, D = x.shape
    n_h, D_w, two_th = w13t.shape
    th = two_th // 2
    H = n_h * th
    assert D_w == D and w2t.shape == (H, D)

    M = B * S
    out_dtype = x.dtype
    out_itemsize = jnp.dtype(out_dtype).itemsize
    out_is_f32 = jnp.dtype(out_dtype) == jnp.dtype(jnp.float32)

    vmem_budget = _vmem_budget_bytes()
    if tm is None:
        tm = _pick_tm(M, D, th, out_itemsize, vmem_budget)
    assert tm % 16 == 0 and tm >= 16, "tm must be a multiple of 16 (bf16 sublane packing)"

    x2d = x.reshape(M, D)
    if x2d.dtype != w13t.dtype:
        x2d = x2d.astype(w13t.dtype)          # bf16 for the MXU dots

    grid_m = pl.cdiv(M, tm)
    grid = (grid_m, n_h)

    w_bytes = jnp.dtype(w13t.dtype).itemsize
    cost = pl.CostEstimate(
        flops=6 * grid_m * tm * D * H,                       # 4MDH (gate/up) + 2MHD (down)
        transcendentals=grid_m * tm * H,                     # sigmoid
        bytes_accessed=(M * D * x2d.dtype.itemsize           # x read once
                        + grid_m * 3 * H * D * w_bytes       # weights re-streamed per token tile
                        + M * D * out_itemsize))             # output

    scratch_shapes = [] if out_is_f32 else [pltpu.VMEM((tm, D), jnp.float32)]

    out2d = pl.pallas_call(
        _ffn_kernel,
        out_shape=jax.ShapeDtypeStruct((M, D), out_dtype),
        grid_spec=pltpu.PrefetchScalarGridSpec(
            num_scalar_prefetch=0,
            grid=grid,
            in_specs=[
                pl.BlockSpec((tm, D), lambda i, h: (i, 0)),          # x token tile
                pl.BlockSpec((1, D, 2 * th), lambda i, h: (h, 0, 0)),  # gate||up slab
                pl.BlockSpec((th, D), lambda i, h: (h, 0)),          # w2 rows
            ],
            out_specs=pl.BlockSpec((tm, D), lambda i, h: (i, 0)),
            scratch_shapes=scratch_shapes,
        ),
        compiler_params=pltpu.CompilerParams(
            dimension_semantics=("parallel", "arbitrary"),
            vmem_limit_bytes=vmem_budget,
        ),
        cost_estimate=cost,
    )(x2d, w13t, w2t)

    return out2d.reshape(B, S, D)


def _reference(x, w1, w2, w3):
    h1 = x @ w1.T
    h3 = x @ w3.T
    return (jax.nn.silu(h1) * h3) @ w2.T


if __name__ == "__main__":
    # Module config: dim=128, hidden_dim=None, multiple_of=256, dropout=0.0
    dim = 128
    multiple_of = 256
    hidden_dim = 4 * dim
    hidden_dim = int(2 * hidden_dim / 3)
    hidden_dim = multiple_of * ((hidden_dim + multiple_of - 1) // multiple_of)
    # -> hidden_dim = 512

    B, S = 2, 8

    key = jax.random.PRNGKey(0)
    kx, k1, k2, k3 = jax.random.split(key, 4)
    x = jax.random.normal(kx, (B, S, dim), dtype=jnp.float32)
    # Deterministic parameter init (torch Linear weight layout: [out, in]).
    w1 = jax.random.normal(k1, (hidden_dim, dim), dtype=jnp.float32) * 0.02
    w2 = jax.random.normal(k2, (dim, hidden_dim), dtype=jnp.float32) * 0.02
    w3 = jax.random.normal(k3, (hidden_dim, dim), dtype=jnp.float32) * 0.02

    # One-time weight preparation (canonical-layout restack + bf16 cast).
    w13t, w2t = prepare_ffn_weights(w1, w2, w3, th=512)

    out = feed_forward(x, w13t, w2t)
    out = jax.block_until_ready(out)

    ref = _reference(x, w1, w2, w3)
    assert out.shape == (B, S, dim)
    # bf16 matmul inputs -> loosened tolerance vs. the f32 reference.
    assert jnp.allclose(out, ref, atol=2e-2, rtol=2e-2), \
        float(jnp.max(jnp.abs(out - ref)))

    print("KERNEL_OK")
</pallas_src>

<mosaic_0001>
module attributes {stable_mosaic.version = 11 : i64} {
  func.func @_ffn_kernel(%arg0: i32, %arg1: i32, %arg2: memref<16x128xbf16, #tpu.memory_space<vmem>>, %arg3: memref<1x128x1024xbf16, #tpu.memory_space<vmem>>, %arg4: memref<512x128xbf16, #tpu.memory_space<vmem>>, %arg5: memref<16x128xf32, #tpu.memory_space<vmem>>) attributes {dimension_semantics = [#tpu.dimension_semantics<parallel>, #tpu.dimension_semantics<arbitrary>], iteration_bounds = array<i64: 1, 1>, scalar_prefetch = 0 : i64, scratch_operands = 0 : i64, tpu.core_type = #tpu.core_type<tc>, window_params = [{transform_indices = @transform_0, window_bounds = array<i64: 16, 128>}, {transform_indices = @transform_1, window_bounds = array<i64: 1, 128, 1024>}, {transform_indices = @transform_2, window_bounds = array<i64: 512, 128>}, {transform_indices = @transform_3, window_bounds = array<i64: 16, 128>}]} {
    %c0_i32 = arith.constant 0 : i32
    %0 = arith.cmpi eq, %arg1, %c0_i32 : i32
    %1 = arith.extui %0 : i1 to i32
    %c0_i32_0 = arith.constant 0 : i32
    %2 = arith.cmpi ne, %1, %c0_i32_0 : i32
    scf.if %2 {
      %cst_13 = arith.constant 0.000000e+00 : f32
      %22 = vector.broadcast %cst_13 : f32 to vector<16x128xf32>
      %c0_14 = arith.constant 0 : index
      %c0_15 = arith.constant 0 : index
      %23 = vector.load %arg5[%c0_14, %c0_15] : memref<16x128xf32, #tpu.memory_space<vmem>>, vector<16x128xf32>
      tpu.vector_store %arg5[%c0_14, %c0_15], %22 {strides = array<i32>} : memref<16x128xf32, #tpu.memory_space<vmem>>, vector<16x128xf32>,
    } else {
    }
    %c0 = arith.constant 0 : index
    %c0_1 = arith.constant 0 : index
    %3 = vector.load %arg2[%c0, %c0_1] : memref<16x128xbf16, #tpu.memory_space<vmem>>, vector<16x128xbf16>
    %c0_2 = arith.constant 0 : index
    %c0_3 = arith.constant 0 : index
    %c0_4 = arith.constant 0 : index
    %4 = vector.load %arg3[%c0_2, %c0_3, %c0_4] : memref<1x128x1024xbf16, #tpu.memory_space<vmem>>, vector<1x128x1024xbf16>
    %5 = vector.shape_cast %4 : vector<1x128x1024xbf16> to vector<128x1024xbf16>
    %cst = arith.constant dense<0.000000e+00> : vector<16x1024xf32>
    %6 = tpu.matmul %3, %5, %cst {dimension_numbers = #tpu.dot_dimension_numbers<[1], [0], [0], [1], [0, 0, 1, 1], [], []>} : vector<16x128xbf16>, vector<128x1024xbf16>, vector<16x1024xf32> -> vector<16x1024xf32>
    %7 = vector.extract_strided_slice %6 {offsets = [0, 0], sizes = [16, 512], strides = [1, 1]} : vector<16x1024xf32> to vector<16x512xf32>
    %8 = vector.extract_strided_slice %6 {offsets = [0, 512], sizes = [16, 512], strides = [1, 1]} : vector<16x1024xf32> to vector<16x512xf32>
    %9 = arith.negf %7 : vector<16x512xf32>
    %10 = math.exp %9 : vector<16x512xf32>
    %cst_5 = arith.constant 1.000000e+00 : f32
    %11 = vector.broadcast %cst_5 : f32 to vector<16x512xf32>
    %12 = arith.addf %11, %10 : vector<16x512xf32>
    %13 = arith.divf %11, %12 : vector<16x512xf32>
    %14 = arith.mulf %7, %13 : vector<16x512xf32>
    %15 = arith.mulf %14, %8 : vector<16x512xf32>
    %c0_6 = arith.constant 0 : index
    %c0_7 = arith.constant 0 : index
    %16 = vector.load %arg5[%c0_6, %c0_7] : memref<16x128xf32, #tpu.memory_space<vmem>>, vector<16x128xf32>
    %17 = arith.truncf %15 : vector<16x512xf32> to vector<16x512xbf16>
    %c0_8 = arith.constant 0 : index
    %c0_9 = arith.constant 0 : index
    %18 = vector.load %arg4[%c0_8, %c0_9] : memref<512x128xbf16, #tpu.memory_space<vmem>>, vector<512x128xbf16>
    %cst_10 = arith.constant dense<0.000000e+00> : vector<16x128xf32>
    %19 = tpu.matmul %17, %18, %cst_10 {dimension_numbers = #tpu.dot_dimension_numbers<[1], [0], [0], [1], [0, 0, 1, 1], [], []>} : vector<16x512xbf16>, vector<512x128xbf16>, vector<16x128xf32> -> vector<16x128xf32>
    %20 = arith.addf %16, %19 : vector<16x128xf32>
    %c0_11 = arith.constant 0 : index
    %c0_12 = arith.constant 0 : index
    %21 = vector.load %arg5[%c0_11, %c0_12] : memref<16x128xf32, #tpu.memory_space<vmem>>, vector<16x128xf32>
    tpu.vector_store %arg5[%c0_11, %c0_12], %20 {strides = array<i32>} : memref<16x128xf32, #tpu.memory_space<vmem>>, vector<16x128xf32>,
    return
  }
  func.func @transform_0(%arg0: i32, %arg1: i32) -> (i32, i32) {
    %c0_i32 = arith.constant 0 : i32
    %c0_i32_0 = arith.constant 0 : i32
    return %arg0, %c0_i32 : i32, i32
  }
  func.func @transform_1(%arg0: i32, %arg1: i32) -> (i32, i32, i32) {
    %c0_i32 = arith.constant 0 : i32
    %c0_i32_0 = arith.constant 0 : i32
    %c0_i32_1 = arith.constant 0 : i32
    return %arg1, %c0_i32, %c0_i32_0 : i32, i32, i32
  }
  func.func @transform_2(%arg0: i32, %arg1: i32) -> (i32, i32) {
    %c0_i32 = arith.constant 0 : i32
    %c0_i32_0 = arith.constant 0 : i32
    return %arg1, %c0_i32 : i32, i32
  }
  func.func @transform_3(%arg0: i32, %arg1: i32) -> (i32, i32) {
    %c0_i32 = arith.constant 0 : i32
    %c0_i32_0 = arith.constant 0 : i32
    return %arg0, %c0_i32 : i32, i32
  }
}

</mosaic_0001>

<llo_original>
// kernel: tpu_custom_call.1
$region0: #{tpu_custom_call.1}
  #allocation0 [shape = 'u32[]', space=smem, size = 0x4, offset = 0x4, fixed_abs, tag = 'smem constant byte address 0x4 - core index']
  #allocation1 [shape = 'u32[144,128]{1,0:T(1,128)}', space=vmem, size = 0x12000, scoped, tag = 'internal scratch']
  %s0 = inlined_call_operand.hbm [shape: bf16[16,128], index: 0, kind: input, shape index: {}]
  %s1 = inlined_call_operand.hbm [shape: bf16[1,128,1024], index: 1, kind: input, shape index: {}]
  %s2 = inlined_call_operand.hbm [shape: bf16[512,128], index: 2, kind: input, shape index: {}]
  %s3 = inlined_call_operand.hbm [shape: f32[16,128], index: 3, kind: output, shape index: {}]
  %s4 = sld [smem:[#allocation0]]
  $region38: #{tpu_custom_call.1} parent=0
    _
  %s6 = ssub.s32 1, %s4
  %s7 = scalar_select 0, %s6, %s4
  $region1: #{tpu_custom_call.1} parent=0
    #allocation2 [shape = 'u8[4096]{0}', space=vmem, size = 0x1000, scoped, tag = 'input window, operand 0, single buffered']
    #allocation3 [shape = 's32[1]{0}', space=sflag, size = 0x4, scoped, tag = 'scoped memory for tpu_custom_call.1']
    #allocation4 [shape = 's32[1]{0}', space=sflag, size = 0x4, scoped, tag = 'scoped memory for tpu_custom_call.1']
    #allocation5 [shape = 'u8[262144]{0}', space=vmem, size = 0x40000, scoped, tag = 'input window, operand 1, single buffered']
    #allocation6 [shape = 's32[1]{0}', space=sflag, size = 0x4, scoped, tag = 'scoped memory for tpu_custom_call.1']
    #allocation7 [shape = 'u8[131072]{0}', space=vmem, size = 0x20000, scoped, tag = 'input window, operand 2, single buffered']
    #allocation8 [shape = 'u8[8192]{0}', space=vmem, size = 0x2000, scoped, tag = 'output window, operand 0, single buffered']
    %8 = vsyncpa [#allocation3], 0
    %9 = vsyncpa [#allocation6], 0
    %10 = vsyncpa [#allocation4], 0
    // Predicated region
    $region2: #{tpu_custom_call.1} parent=1 // pred_check
      _
    $region3: #{tpu_custom_call.1} parent=1 // pred_check_branch
      %12 = sbr.rel (0) target = $region5
    $region4: #{tpu_custom_call.1} parent=1 // pred_region
      %s14 = ssub.s32 128, 128
      %15 = vsyncadd [#allocation3], %s14
      %s16 = sshll.u32 [#allocation2], 4
      %s17 = int_to_ptr.vmem [resolvable:$true] %s16
      %22 = dma.hbm_to_vmem [thread:$0]  %s0, 128, %s17, [#allocation3], 64, 64, 4
    $region5: #{tpu_custom_call.1} parent=1 // pred_fallthru
      _
    // Predicated region
    $region6: #{tpu_custom_call.1} parent=1 // pred_check
      _
    $region7: #{tpu_custom_call.1} parent=1 // pred_check_branch
      %24 = sbr.rel (0) target = $region9
    $region8: #{tpu_custom_call.1} parent=1 // pred_region
      %s26 = ssub.s32 8192, 8192
      %27 = vsyncadd [#allocation6], %s26
      %s28 = sshll.u32 [#allocation5], 4
      %s29 = int_to_ptr.vmem [resolvable:$true] %s28
      %34 = dma.hbm_to_vmem [thread:$0]  %s1, 8192, %s29, [#allocation6], 512, 512, 32
    $region9: #{tpu_custom_call.1} parent=1 // pred_fallthru
      _
    // Predicated region
    $region10: #{tpu_custom_call.1} parent=1 // pred_check
      _
    $region11: #{tpu_custom_call.1} parent=1 // pred_check_branch
      %36 = sbr.rel (0) target = $region13
    $region12: #{tpu_custom_call.1} parent=1 // pred_region
      %s38 = ssub.s32 4096, 4096
      %39 = vsyncadd [#allocation6], %s38
      %s40 = sshll.u32 [#allocation7], 4
      %s41 = int_to_ptr.vmem [resolvable:$true] %s40
      %46 = dma.hbm_to_vmem [thread:$0]  %s2, 4096, %s41, [#allocation6], 64, 64, 4
    $region13: #{tpu_custom_call.1} parent=1 // pred_fallthru
      _
    // Predicated region
    $region14: #{tpu_custom_call.1} parent=1 // pred_check
      _
    $region15: #{tpu_custom_call.1} parent=1 // pred_check_branch
      %48 = sbr.rel (0) target = $region17
    $region16: #{tpu_custom_call.1} parent=1 // pred_region
      %49 = dma.done [#allocation3], 128
    $region17: #{tpu_custom_call.1} parent=1 // pred_fallthru
      _
    // Predicated region
    $region18: #{tpu_custom_call.1} parent=1 // pred_check
      _
    $region19: #{tpu_custom_call.1} parent=1 // pred_check_branch
      %51 = sbr.rel (0) target = $region21
    $region20: #{tpu_custom_call.1} parent=1 // pred_region
      %52 = dma.done [#allocation6], 8192
    $region21: #{tpu_custom_call.1} parent=1 // pred_fallthru
      _
    // Predicated region
    $region22: #{tpu_custom_call.1} parent=1 // pred_check
      _
    $region23: #{tpu_custom_call.1} parent=1 // pred_check_branch
      %54 = sbr.rel (0) target = $region25
    $region24: #{tpu_custom_call.1} parent=1 // pred_region
      %55 = dma.done [#allocation6], 4096
    $region25: #{tpu_custom_call.1} parent=1 // pred_fallthru
      _
    %p57 = scmp.eq.s32.totalorder 0, 0
    // Predicated region
    $region26: #{tpu_custom_call.1} parent=1 // pred_check
      %p58 = pneg %p57
    $region27: #{tpu_custom_call.1} parent=1 // pred_check_branch
      %60 = sbr.rel (%p58) target = $region29
    $region28: #{tpu_custom_call.1} parent=1 // pred_region
      %61 = vst [vmem:[#allocation8] sm:$0xff] 0.0
      %62 = vst [vmem:[#allocation8 + $0x8] sm:$0xff] 0.0
    $region29: #{tpu_custom_call.1} parent=1 // pred_fallthru
      _
    %v63 = vld [vmem:[#allocation2] sm:$0xf]
    %v64 = vld [vmem:[#allocation2 + $0x4] sm:$0xf]
    %v65 = vld [vmem:[#allocation5] sm:$0xff]
    %v66 = vld [vmem:[#allocation5 + $0x8] sm:$0xff]
    %v67 = vld [vmem:[#allocation5 + $0x10] sm:$0xff]
    %v68 = vld [vmem:[#allocation5 + $0x18] sm:$0xff]
    %v69 = vld [vmem:[#allocation5 + $0x20] sm:$0xff]
    %v70 = vld [vmem:[#allocation5 + $0x28] sm:$0xff]
    %v71 = vld [vmem:[#allocation5 + $0x30] sm:$0xff]
    %v72 = vld [vmem:[#allocation5 + $0x38] sm:$0xff]
    %v73 = vld [vmem:[#allocation5 + $0x40] sm:$0xff]
    %v74 = vld [vmem:[#allocation5 + $0x48] sm:$0xff]
    %v75 = vld [vmem:[#allocation5 + $0x50] sm:$0xff]
    %v76 = vld [vmem:[#allocation5 + $0x58] sm:$0xff]
    %v77 = vld [vmem:[#allocation5 + $0x60] sm:$0xff]
    %v78 = vld [vmem:[#allocation5 + $0x68] sm:$0xff]
    %v79 = vld [vmem:[#allocation5 + $0x70] sm:$0xff]
    %v80 = vld [vmem:[#allocation5 + $0x78] sm:$0xff]
    %v81 = vld [vmem:[#allocation5 + $0x80] sm:$0xff]
    %v82 = vld [vmem:[#allocation5 + $0x88] sm:$0xff]
    %v83 = vld [vmem:[#allocation5 + $0x90] sm:$0xff]
    %v84 = vld [vmem:[#allocation5 + $0x98] sm:$0xff]
    %v85 = vld [vmem:[#allocation5 + $0xa0] sm:$0xff]
    %v86 = vld [vmem:[#allocation5 + $0xa8] sm:$0xff]
    %v87 = vld [vmem:[#allocation5 + $0xb0] sm:$0xff]
    %v88 = vld [vmem:[#allocation5 + $0xb8] sm:$0xff]
    %v89 = vld [vmem:[#allocation5 + $0xc0] sm:$0xff]
    %v90 = vld [vmem:[#allocation5 + $0xc8] sm:$0xff]
    %v91 = vld [vmem:[#allocation5 + $0xd0] sm:$0xff]
    %v92 = vld [vmem:[#allocation5 + $0xd8] sm:$0xff]
    %v93 = vld [vmem:[#allocation5 + $0xe0] sm:$0xff]
    %v94 = vld [vmem:[#allocation5 + $0xe8] sm:$0xff]
    %v95 = vld [vmem:[#allocation5 + $0xf0] sm:$0xff]
    %v96 = vld [vmem:[#allocation5 + $0xf8] sm:$0xff]
    %v97 = vld [vmem:[#allocation5 + $0x100] sm:$0xff]
    %v98 = vld [vmem:[#allocation5 + $0x108] sm:$0xff]
    %v99 = vld [vmem:[#allocation5 + $0x110] sm:$0xff]
    %v100 = vld [vmem:[#allocation5 + $0x118] sm:$0xff]
    %v101 = vld [vmem:[#allocation5 + $0x120] sm:$0xff]
    %v102 = vld [vmem:[#allocation5 + $0x128] sm:$0xff]
    %v103 = vld [vmem:[#allocation5 + $0x130] sm:$0xff]
    %v104 = vld [vmem:[#allocation5 + $0x138] sm:$0xff]
    %v105 = vld [vmem:[#allocation5 + $0x140] sm:$0xff]
    %v106 = vld [vmem:[#allocation5 + $0x148] sm:$0xff]
    %v107 = vld [vmem:[#allocation5 + $0x150] sm:$0xff]
    %v108 = vld [vmem:[#allocation5 + $0x158] sm:$0xff]
    %v109 = vld [vmem:[#allocation5 + $0x160] sm:$0xff]
    %v110 = vld [vmem:[#allocation5 + $0x168] sm:$0xff]
    %v111 = vld [vmem:[#allocation5 + $0x170] sm:$0xff]
    %v112 = vld [vmem:[#allocation5 + $0x178] sm:$0xff]
    %v113 = vld [vmem:[#allocation5 + $0x180] sm:$0xff]
    %v114 = vld [vmem:[#allocation5 + $0x188] sm:$0xff]
    %v115 = vld [vmem:[#allocation5 + $0x190] sm:$0xff]
    %v116 = vld [vmem:[#allocation5 + $0x198] sm:$0xff]
    %v117 = vld [vmem:[#allocation5 + $0x1a0] sm:$0xff]
    %v118 = vld [vmem:[#allocation5 + $0x1a8] sm:$0xff]
    %v119 = vld [vmem:[#allocation5 + $0x1b0] sm:$0xff]
    %v120 = vld [vmem:[#allocation5 + $0x1b8] sm:$0xff]
    %v121 = vld [vmem:[#allocation5 + $0x1c0] sm:$0xff]
    %v122 = vld [vmem:[#allocation5 + $0x1c8] sm:$0xff]
    %v123 = vld [vmem:[#allocation5 + $0x1d0] sm:$0xff]
    %v124 = vld [vmem:[#allocation5 + $0x1d8] sm:$0xff]
    %v125 = vld [vmem:[#allocation5 + $0x1e0] sm:$0xff]
    %v126 = vld [vmem:[#allocation5 + $0x1e8] sm:$0xff]
    %v127 = vld [vmem:[#allocation5 + $0x1f0] sm:$0xff]
    %v128 = vld [vmem:[#allocation5 + $0x1f8] sm:$0xff]
    %v131 = vunpack.c.l.b16 %v63
    %v132 = vunpack.c.l.b16 %v64
    %v133 = vpack.c.b16 %v132, %v131
    %v199 = vunpack.c.l.b16 %v65
    %v200 = vunpack.c.h.b16 %v65
    %v201 = vunpack.c.l.b16 %v66
    %v202 = vunpack.c.h.b16 %v66
    %v203 = vunpack.c.l.b16 %v67
    %v204 = vunpack.c.h.b16 %v67
    %v205 = vunpack.c.l.b16 %v68
    %v206 = vunpack.c.h.b16 %v68
    %v207 = vunpack.c.l.b16 %v69
    %v208 = vunpack.c.h.b16 %v69
    %v209 = vunpack.c.l.b16 %v70
    %v210 = vunpack.c.h.b16 %v70
    %v211 = vunpack.c.l.b16 %v71
    %v212 = vunpack.c.h.b16 %v71
    %v213 = vunpack.c.l.b16 %v72
    %v214 = vunpack.c.h.b16 %v72
    %v215 = vunpack.c.l.b16 %v73
    %v216 = vunpack.c.h.b16 %v73
    %v217 = vunpack.c.l.b16 %v74
    %v218 = vunpack.c.h.b16 %v74
    %v219 = vunpack.c.l.b16 %v75
    %v220 = vunpack.c.h.b16 %v75
    %v221 = vunpack.c.l.b16 %v76
    %v222 = vunpack.c.h.b16 %v76
    %v223 = vunpack.c.l.b16 %v77
    %v224 = vunpack.c.h.b16 %v77
    %v225 = vunpack.c.l.b16 %v78
    %v226 = vunpack.c.h.b16 %v78
    %v227 = vunpack.c.l.b16 %v79
    %v228 = vunpack.c.h.b16 %v79
    %v229 = vunpack.c.l.b16 %v80
    %v230 = vunpack.c.h.b16 %v80
    %v231 = vunpack.c.l.b16 %v81
    %v232 = vunpack.c.h.b16 %v81
    %v233 = vunpack.c.l.b16 %v82
    %v234 = vunpack.c.h.b16 %v82
    %v235 = vunpack.c.l.b16 %v83
    %v236 = vunpack.c.h.b16 %v83
    %v237 = vunpack.c.l.b16 %v84
    %v238 = vunpack.c.h.b16 %v84
    %v239 = vunpack.c.l.b16 %v85
    %v240 = vunpack.c.h.b16 %v85
    %v241 = vunpack.c.l.b16 %v86
    %v242 = vunpack.c.h.b16 %v86
    %v243 = vunpack.c.l.b16 %v87
    %v244 = vunpack.c.h.b16 %v87
    %v245 = vunpack.c.l.b16 %v88
    %v246 = vunpack.c.h.b16 %v88
    %v247 = vunpack.c.l.b16 %v89
    %v248 = vunpack.c.h.b16 %v89
    %v249 = vunpack.c.l.b16 %v90
    %v250 = vunpack.c.h.b16 %v90
    %v251 = vunpack.c.l.b16 %v91
    %v252 = vunpack.c.h.b16 %v91
    %v253 = vunpack.c.l.b16 %v92
    %v254 = vunpack.c.h.b16 %v92
    %v255 = vunpack.c.l.b16 %v93
    %v256 = vunpack.c.h.b16 %v93
    %v257 = vunpack.c.l.b16 %v94
    %v258 = vunpack.c.h.b16 %v94
    %v259 = vunpack.c.l.b16 %v95
    %v260 = vunpack.c.h.b16 %v95
    %v261 = vunpack.c.l.b16 %v96
    %v262 = vunpack.c.h.b16 %v96
    %v263 = vunpack.c.l.b16 %v97
    %v264 = vunpack.c.h.b16 %v97
    %v265 = vunpack.c.l.b16 %v98
    %v266 = vunpack.c.h.b16 %v98
    %v267 = vunpack.c.l.b16 %v99
    %v268 = vunpack.c.h.b16 %v99
    %v269 = vunpack.c.l.b16 %v100
    %v270 = vunpack.c.h.b16 %v100
    %v271 = vunpack.c.l.b16 %v101
    %v272 = vunpack.c.h.b16 %v101
    %v273 = vunpack.c.l.b16 %v102
    %v274 = vunpack.c.h.b16 %v102
    %v275 = vunpack.c.l.b16 %v103
    %v276 = vunpack.c.h.b16 %v103
    %v277 = vunpack.c.l.b16 %v104
    %v278 = vunpack.c.h.b16 %v104
    %v279 = vunpack.c.l.b16 %v105
    %v280 = vunpack.c.h.b16 %v105
    %v281 = vunpack.c.l.b16 %v106
    %v282 = vunpack.c.h.b16 %v106
    %v283 = vunpack.c.l.b16 %v107
    %v284 = vunpack.c.h.b16 %v107
    %v285 = vunpack.c.l.b16 %v108
    %v286 = vunpack.c.h.b16 %v108
    %v287 = vunpack.c.l.b16 %v109
    %v288 = vunpack.c.h.b16 %v109
    %v289 = vunpack.c.l.b16 %v110
    %v290 = vunpack.c.h.b16 %v110
    %v291 = vunpack.c.l.b16 %v111
    %v292 = vunpack.c.h.b16 %v111
    %v293 = vunpack.c.l.b16 %v112
    %v294 = vunpack.c.h.b16 %v112
    %v295 = vunpack.c.l.b16 %v113
    %v296 = vunpack.c.h.b16 %v113
    %v297 = vunpack.c.l.b16 %v114
    %v298 = vunpack.c.h.b16 %v114
    %v299 = vunpack.c.l.b16 %v115
    %v300 = vunpack.c.h.b16 %v115
    %v301 = vunpack.c.l.b16 %v116
    %v302 = vunpack.c.h.b16 %v116
    %v303 = vunpack.c.l.b16 %v117
    %v304 = vunpack.c.h.b16 %v117
    %v305 = vunpack.c.l.b16 %v118
    %v306 = vunpack.c.h.b16 %v118
    %v307 = vunpack.c.l.b16 %v119
    %v308 = vunpack.c.h.b16 %v119
    %v309 = vunpack.c.l.b16 %v120
    %v310 = vunpack.c.h.b16 %v120
    %v311 = vunpack.c.l.b16 %v121
    %v312 = vunpack.c.h.b16 %v121
    %v313 = vunpack.c.l.b16 %v122
    %v314 = vunpack.c.h.b16 %v122
    %v315 = vunpack.c.l.b16 %v123
    %v316 = vunpack.c.h.b16 %v123
    %v317 = vunpack.c.l.b16 %v124
    %v318 = vunpack.c.h.b16 %v124
    %v319 = vunpack.c.l.b16 %v125
    %v320 = vunpack.c.h.b16 %v125
    %v321 = vunpack.c.l.b16 %v126
    %v322 = vunpack.c.h.b16 %v126
    %v323 = vunpack.c.l.b16 %v127
    %v324 = vunpack.c.h.b16 %v127
    %v325 = vunpack.c.l.b16 %v128
    %v326 = vunpack.c.h.b16 %v128
    %v327 = vpack.c.b16 %v207, %v199
    %v328 = vpack.c.b16 %v208, %v200
    %v329 = vpack.c.b16 %v209, %v201
    %v330 = vpack.c.b16 %v210, %v202
    %v331 = vpack.c.b16 %v211, %v203
    %v332 = vpack.c.b16 %v212, %v204
    %v333 = vpack.c.b16 %v213, %v205
    %v334 = vpack.c.b16 %v214, %v206
    %v335 = vpack.c.b16 %v223, %v215
    %v336 = vpack.c.b16 %v224, %v216
    %v337 = vpack.c.b16 %v225, %v217
    %v338 = vpack.c.b16 %v226, %v218
    %v339 = vpack.c.b16 %v227, %v219
    %v340 = vpack.c.b16 %v228, %v220
    %v341 = vpack.c.b16 %v229, %v221
    %v342 = vpack.c.b16 %v230, %v222
    %v343 = vpack.c.b16 %v239, %v231
    %v344 = vpack.c.b16 %v240, %v232
    %v345 = vpack.c.b16 %v241, %v233
    %v346 = vpack.c.b16 %v242, %v234
    %v347 = vpack.c.b16 %v243, %v235
    %v348 = vpack.c.b16 %v244, %v236
    %v349 = vpack.c.b16 %v245, %v237
    %v350 = vpack.c.b16 %v246, %v238
    %v351 = vpack.c.b16 %v255, %v247
    %v352 = vpack.c.b16 %v256, %v248
    %v353 = vpack.c.b16 %v257, %v249
    %v354 = vpack.c.b16 %v258, %v250
    %v355 = vpack.c.b16 %v259, %v251
    %v356 = vpack.c.b16 %v260, %v252
    %v357 = vpack.c.b16 %v261, %v253
    %v358 = vpack.c.b16 %v262, %v254
    %v359 = vpack.c.b16 %v271, %v263
    %v360 = vpack.c.b16 %v272, %v264
    %v361 = vpack.c.b16 %v273, %v265
    %v362 = vpack.c.b16 %v274, %v266
    %v363 = vpack.c.b16 %v275, %v267
    %v364 = vpack.c.b16 %v276, %v268
    %v365 = vpack.c.b16 %v277, %v269
    %v366 = vpack.c.b16 %v278, %v270
    %v367 = vpack.c.b16 %v287, %v279
    %v368 = vpack.c.b16 %v288, %v280
    %v369 = vpack.c.b16 %v289, %v281
    %v370 = vpack.c.b16 %v290, %v282
    %v371 = vpack.c.b16 %v291, %v283
    %v372 = vpack.c.b16 %v292, %v284
    %v373 = vpack.c.b16 %v293, %v285
    %v374 = vpack.c.b16 %v294, %v286
    %v375 = vpack.c.b16 %v303, %v295
    %v376 = vpack.c.b16 %v304, %v296
    %v377 = vpack.c.b16 %v305, %v297
    %v378 = vpack.c.b16 %v306, %v298
    %v379 = vpack.c.b16 %v307, %v299
    %v380 = vpack.c.b16 %v308, %v300
    %v381 = vpack.c.b16 %v309, %v301
    %v382 = vpack.c.b16 %v310, %v302
    %v383 = vpack.c.b16 %v319, %v311
    %v384 = vpack.c.b16 %v320, %v312
    %v385 = vpack.c.b16 %v321, %v313
    %v386 = vpack.c.b16 %v322, %v314
    %v387 = vpack.c.b16 %v323, %v315
    %v388 = vpack.c.b16 %v324, %v316
    %v389 = vpack.c.b16 %v325, %v317
    %v390 = vpack.c.b16 %v326, %v318
    %455 = vmatprep.subr.bf16.mxu0 %v384
    %456 = vmatpush1.bf16.msra.mxu0 %v383
    %457 = vmatprep.subr.bf16.mxu0 %v376
    %458 = vmatpush1.bf16.msra.mxu0 %v375
    %459 = vmatprep.subr.bf16.mxu0 %v368
    %460 = vmatpush1.bf16.msra.mxu0 %v367
    %461 = vmatprep.subr.bf16.mxu0 %v360
    %462 = vmatpush1.bf16.msra.mxu0 %v359
    %463 = vmatprep.subr.bf16.mxu0 %v352
    %464 = vmatpush1.bf16.msra.mxu0 %v351
    %465 = vmatprep.subr.bf16.mxu0 %v344
    %466 = vmatpush1.bf16.msra.mxu0 %v343
    %467 = vmatprep.subr.bf16.mxu0 %v336
    %468 = vmatpush1.bf16.msra.mxu0 %v335
    %469 = vmatprep.subr.bf16.mxu0 %v328
    %470 = vmatpush1.bf16.msra.mxu0 %v327
    %471 = vmatprep.subr.bf16.mxu0 0
    %472 = vmatpush2.bf16.msra.mxu0 0
    %473 = vmatprep.subr.bf16.mxu0 0
    %474 = vmatpush2.bf16.msra.mxu0 0
    %475 = vmatprep.subr.bf16.mxu0 0
    %476 = vmatpush2.bf16.msra.mxu0 0
    %477 = vmatprep.subr.bf16.mxu0 0
    %478 = vmatpush2.bf16.msra.mxu0 0
    %479 = vmatprep.subr.bf16.mxu0 0
    %480 = vmatpush2.bf16.msra.mxu0 0
    %481 = vmatprep.subr.bf16.mxu0 0
    %482 = vmatpush2.bf16.msra.mxu0 0
    %483 = vmatprep.subr.bf16.mxu0 0
    %484 = vmatpush2.bf16.msra.mxu0 0
    %485 = vmatprep.subr.bf16.mxu0 0
    %486 = vmatpush2.bf16.msra.mxu0 0
    %487 = vmatprep.mubr.bf16.mxu0 0
    %488 = vmatmul.mubr.bf16.gmra.mxu0 %v133
    %v489 = vpop.f32.mrf.mxu0
    %v490 = vadd.f32 0.0, %v489
    %v491 = vpop.f32.mrf.mxu0
    %v492 = vadd.f32 0.0, %v491
    %v493 = vpop.f32.mrf.mxu0
    %v494 = vadd.f32 0.0, %v493
    %v495 = vpop.f32.mrf.mxu0
    %v496 = vadd.f32 0.0, %v495
    %497 = vdwg.mxu0
    %498 = vmatprep.subr.bf16.mxu0 %v386
    %499 = vmatpush1.bf16.msra.mxu0 %v385
    %500 = vmatprep.subr.bf16.mxu0 %v378
    %501 = vmatpush1.bf16.msra.mxu0 %v377
    %502 = vmatprep.subr.bf16.mxu0 %v370
    %503 = vmatpush1.bf16.msra.mxu0 %v369
    %504 = vmatprep.subr.bf16.mxu0 %v362
    %505 = vmatpush1.bf16.msra.mxu0 %v361
    %506 = vmatprep.subr.bf16.mxu0 %v354
    %507 = vmatpush1.bf16.msra.mxu0 %v353
    %508 = vmatprep.subr.bf16.mxu0 %v346
    %509 = vmatpush1.bf16.msra.mxu0 %v345
    %510 = vmatprep.subr.bf16.mxu0 %v338
    %511 = vmatpush1.bf16.msra.mxu0 %v337
    %512 = vmatprep.subr.bf16.mxu0 %v330
    %513 = vmatpush1.bf16.msra.mxu0 %v329
    %514 = vmatprep.subr.bf16.mxu0 0
    %515 = vmatpush2.bf16.msra.mxu0 0
    %516 = vmatprep.subr.bf16.mxu0 0
    %517 = vmatpush2.bf16.msra.mxu0 0
    %518 = vmatprep.subr.bf16.mxu0 0
    %519 = vmatpush2.bf16.msra.mxu0 0
    %520 = vmatprep.subr.bf16.mxu0 0
    %521 = vmatpush2.bf16.msra.mxu0 0
    %522 = vmatprep.subr.bf16.mxu0 0
    %523 = vmatpush2.bf16.msra.mxu0 0
    %524 = vmatprep.subr.bf16.mxu0 0
    %525 = vmatpush2.bf16.msra.mxu0 0
    %526 = vmatprep.subr.bf16.mxu0 0
    %527 = vmatpush2.bf16.msra.mxu0 0
    %528 = vmatprep.subr.bf16.mxu0 0
    %529 = vmatpush2.bf16.msra.mxu0 0
    %530 = vmatprep.mubr.bf16.mxu0 0
    %531 = vmatmul.mubr.bf16.gmra.mxu0 %v133
    %v532 = vpop.f32.mrf.mxu0
    %v533 = vadd.f32 0.0, %v532
    %v534 = vpop.f32.mrf.mxu0
    %v535 = vadd.f32 0.0, %v534
    %v536 = vpop.f32.mrf.mxu0
    %v537 = vadd.f32 0.0, %v536
    %v538 = vpop.f32.mrf.mxu0
    %v539 = vadd.f32 0.0, %v538
    %540 = vdwg.mxu0
    %541 = vmatprep.subr.bf16.mxu0 %v388
    %542 = vmatpush1.bf16.msra.mxu0 %v387
    %543 = vmatprep.subr.bf16.mxu0 %v380
    %544 = vmatpush1.bf16.msra.mxu0 %v379
    %545 = vmatprep.subr.bf16.mxu0 %v372
    %546 = vmatpush1.bf16.msra.mxu0 %v371
    %547 = vmatprep.subr.bf16.mxu0 %v364
    %548 = vmatpush1.bf16.msra.mxu0 %v363
    %549 = vmatprep.subr.bf16.mxu0 %v356
    %550 = vmatpush1.bf16.msra.mxu0 %v355
    %551 = vmatprep.subr.bf16.mxu0 %v348
    %552 = vmatpush1.bf16.msra.mxu0 %v347
    %553 = vmatprep.subr.bf16.mxu0 %v340
    %554 = vmatpush1.bf16.msra.mxu0 %v339
    %555 = vmatprep.subr.bf16.mxu0 %v332
    %556 = vmatpush1.bf16.msra.mxu0 %v331
    %557 = vmatprep.subr.bf16.mxu0 0
    %558 = vmatpush2.bf16.msra.mxu0 0
    %559 = vmatprep.subr.bf16.mxu0 0
    %560 = vmatpush2.bf16.msra.mxu0 0
    %561 = vmatprep.subr.bf16.mxu0 0
    %562 = vmatpush2.bf16.msra.mxu0 0
    %563 = vmatprep.subr.bf16.mxu0 0
    %564 = vmatpush2.bf16.msra.mxu0 0
    %565 = vmatprep.subr.bf16.mxu0 0
    %566 = vmatpush2.bf16.msra.mxu0 0
    %567 = vmatprep.subr.bf16.mxu0 0
    %568 = vmatpush2.bf16.msra.mxu0 0
    %569 = vmatprep.subr.bf16.mxu0 0
    %570 = vmatpush2.bf16.msra.mxu0 0
    %571 = vmatprep.subr.bf16.mxu0 0
    %572 = vmatpush2.bf16.msra.mxu0 0
    %573 = vmatprep.mubr.bf16.mxu0 0
    %574 = vmatmul.mubr.bf16.gmra.mxu0 %v133
    %v575 = vpop.f32.mrf.mxu0
    %v576 = vadd.f32 0.0, %v575
    %v577 = vpop.f32.mrf.mxu0
    %v578 = vadd.f32 0.0, %v577
    %v579 = vpop.f32.mrf.mxu0
    %v580 = vadd.f32 0.0, %v579
    %v581 = vpop.f32.mrf.mxu0
    %v582 = vadd.f32 0.0, %v581
    %583 = vdwg.mxu0
    %584 = vmatprep.subr.bf16.mxu0 %v390
    %585 = vmatpush1.bf16.msra.mxu0 %v389
    %586 = vmatprep.subr.bf16.mxu0 %v382
    %587 = vmatpush1.bf16.msra.mxu0 %v381
    %588 = vmatprep.subr.bf16.mxu0 %v374
    %589 = vmatpush1.bf16.msra.mxu0 %v373
    %590 = vmatprep.subr.bf16.mxu0 %v366
    %591 = vmatpush1.bf16.msra.mxu0 %v365
    %592 = vmatprep.subr.bf16.mxu0 %v358
    %593 = vmatpush1.bf16.msra.mxu0 %v357
    %594 = vmatprep.subr.bf16.mxu0 %v350
    %595 = vmatpush1.bf16.msra.mxu0 %v349
    %596 = vmatprep.subr.bf16.mxu0 %v342
    %597 = vmatpush1.bf16.msra.mxu0 %v341
    %598 = vmatprep.subr.bf16.mxu0 %v334
    %599 = vmatpush1.bf16.msra.mxu0 %v333
    %600 = vmatprep.subr.bf16.mxu0 0
    %601 = vmatpush2.bf16.msra.mxu0 0
    %602 = vmatprep.subr.bf16.mxu0 0
    %603 = vmatpush2.bf16.msra.mxu0 0
    %604 = vmatprep.subr.bf16.mxu0 0
    %605 = vmatpush2.bf16.msra.mxu0 0
    %606 = vmatprep.subr.bf16.mxu0 0
    %607 = vmatpush2.bf16.msra.mxu0 0
    %608 = vmatprep.subr.bf16.mxu0 0
    %609 = vmatpush2.bf16.msra.mxu0 0
    %610 = vmatprep.subr.bf16.mxu0 0
    %611 = vmatpush2.bf16.msra.mxu0 0
    %612 = vmatprep.subr.bf16.mxu0 0
    %613 = vmatpush2.bf16.msra.mxu0 0
    %614 = vmatprep.subr.bf16.mxu0 0
    %615 = vmatpush2.bf16.msra.mxu0 0
    %616 = vmatprep.mubr.bf16.mxu0 0
    %617 = vmatmul.mubr.bf16.gmra.mxu0 %v133
    %v618 = vpop.f32.mrf.mxu0
    %v619 = vadd.f32 0.0, %v618
    %v620 = vpop.f32.mrf.mxu0
    %v621 = vadd.f32 0.0, %v620
    %v622 = vpop.f32.mrf.mxu0
    %v623 = vadd.f32 0.0, %v622
    %v624 = vpop.f32.mrf.mxu0
    %v625 = vadd.f32 0.0, %v624
    %626 = vdwg.mxu0
    %v627 = vxor.u32 %v490, 2147483648
    %v628 = vxor.u32 %v492, 2147483648
    %v629 = vxor.u32 %v533, 2147483648
    %v630 = vxor.u32 %v535, 2147483648
    %v631 = vxor.u32 %v494, 2147483648
    %v632 = vxor.u32 %v496, 2147483648
    %v633 = vxor.u32 %v537, 2147483648
    %v634 = vxor.u32 %v539, 2147483648
    %v635 = vmul.f32 %v627, 1.442695
    %v636 = vpow.pop %v635
    %v637 = vmul.f32 %v628, 1.442695
    %v638 = vpow.pop %v637
    %v639 = vmul.f32 %v629, 1.442695
    %v640 = vpow.pop %v639
    %v641 = vmul.f32 %v630, 1.442695
    %v642 = vpow.pop %v641
    %v643 = vmul.f32 %v631, 1.442695
    %v644 = vpow.pop %v643
    %v645 = vmul.f32 %v632, 1.442695
    %v646 = vpow.pop %v645
    %v647 = vmul.f32 %v633, 1.442695
    %v648 = vpow.pop %v647
    %v649 = vmul.f32 %v634, 1.442695
    %v650 = vpow.pop %v649
    %v651 = vadd.f32 %v636, 1.0
    %v652 = vadd.f32 %v638, 1.0
    %v653 = vadd.f32 %v640, 1.0
    %v654 = vadd.f32 %v642, 1.0
    %v655 = vadd.f32 %v644, 1.0
    %v656 = vadd.f32 %v646, 1.0
    %v657 = vadd.f32 %v648, 1.0
    %v658 = vadd.f32 %v650, 1.0
    %v659 = vrcp.pop %v651
    %v660 = vmul.f32 1.0, %v659
    %v661 = vrcp.pop %v652
    %v662 = vmul.f32 1.0, %v661
    %v663 = vrcp.pop %v653
    %v664 = vmul.f32 1.0, %v663
    %v665 = vrcp.pop %v654
    %v666 = vmul.f32 1.0, %v665
    %v667 = vrcp.pop %v655
    %v668 = vmul.f32 1.0, %v667
    %v669 = vrcp.pop %v656
    %v670 = vmul.f32 1.0, %v669
    %v671 = vrcp.pop %v657
    %v672 = vmul.f32 1.0, %v671
    %v673 = vrcp.pop %v658
    %v674 = vmul.f32 1.0, %v673
    %v675 = vmul.f32 %v490, %v660
    %v676 = vmul.f32 %v492, %v662
    %v677 = vmul.f32 %v533, %v664
    %v678 = vmul.f32 %v535, %v666
    %v679 = vmul.f32 %v494, %v668
    %v680 = vmul.f32 %v496, %v670
    %v681 = vmul.f32 %v537, %v672
    %v682 = vmul.f32 %v539, %v674
    %v683 = vmul.f32 %v675, %v576
    %v684 = vmul.f32 %v676, %v578
    %v685 = vmul.f32 %v677, %v619
    %v686 = vmul.f32 %v678, %v621
    %v687 = vmul.f32 %v679, %v580
    %v688 = vmul.f32 %v680, %v582
    %v689 = vmul.f32 %v681, %v623
    %v690 = vmul.f32 %v682, %v625
    %v691 = vld [vmem:[#allocation8] sm:$0xff]
    %v692 = vld [vmem:[#allocation8 + $0x8] sm:$0xff]
    %v693 = vpack.c.bf16 %v687, %v683
    %v694 = vpack.c.bf16 %v688, %v684
    %v695 = vpack.c.bf16 %v689, %v685
    %v696 = vpack.c.bf16 %v690, %v686
    %v697 = vld [vmem:[#allocation7] sm:$0xf]
    %v698 = vld [vmem:[#allocation7 + $0x4] sm:$0xf]
    %v699 = vld [vmem:[#allocation7 + $0x8] sm:$0xf]
    %v700 = vld [vmem:[#allocation7 + $0xc] sm:$0xf]
    %v701 = vld [vmem:[#allocation7 + $0x10] sm:$0xf]
    %v702 = vld [vmem:[#allocation7 + $0x14] sm:$0xf]
    %v703 = vld [vmem:[#allocation7 + $0x18] sm:$0xf]
    %v704 = vld [vmem:[#allocation7 + $0x1c] sm:$0xf]
    %v705 = vld [vmem:[#allocation7 + $0x20] sm:$0xf]
    %v706 = vld [vmem:[#allocation7 + $0x24] sm:$0xf]
    %v707 = vld [vmem:[#allocation7 + $0x28] sm:$0xf]
    %v708 = vld [vmem:[#allocation7 + $0x2c] sm:$0xf]
    %v709 = vld [vmem:[#allocation7 + $0x30] sm:$0xf]
    %v710 = vld [vmem:[#allocation7 + $0x34] sm:$0xf]
    %v711 = vld [vmem:[#allocation7 + $0x38] sm:$0xf]
    %v712 = vld [vmem:[#allocation7 + $0x3c] sm:$0xf]
    %v713 = vld [vmem:[#allocation7 + $0x40] sm:$0xf]
    %v714 = vld [vmem:[#allocation7 + $0x44] sm:$0xf]
    %v715 = vld [vmem:[#allocation7 + $0x48] sm:$0xf]
    %v716 = vld [vmem:[#allocation7 + $0x4c] sm:$0xf]
    %v717 = vld [vmem:[#allocation7 + $0x50] sm:$0xf]
    %v718 = vld [vmem:[#allocation7 + $0x54] sm:$0xf]
    %v719 = vld [vmem:[#allocation7 + $0x58] sm:$0xf]
    %v720 = vld [vmem:[#allocation7 + $0x5c] sm:$0xf]
    %v721 = vld [vmem:[#allocation7 + $0x60] sm:$0xf]
    %v722 = vld [vmem:[#allocation7 + $0x64] sm:$0xf]
    %v723 = vld [vmem:[#allocation7 + $0x68] sm:$0xf]
    %v724 = vld [vmem:[#allocation7 + $0x6c] sm:$0xf]
    %v725 = vld [vmem:[#allocation7 + $0x70] sm:$0xf]
    %v726 = vld [vmem:[#allocation7 + $0x74] sm:$0xf]
    %v727 = vld [vmem:[#allocation7 + $0x78] sm:$0xf]
    %v728 = vld [vmem:[#allocation7 + $0x7c] sm:$0xf]
    %v729 = vld [vmem:[#allocation7 + $0x80] sm:$0xf]
    %v730 = vld [vmem:[#allocation7 + $0x84] sm:$0xf]
    %v731 = vld [vmem:[#allocation7 + $0x88] sm:$0xf]
    %v732 = vld [vmem:[#allocation7 + $0x8c] sm:$0xf]
    %v733 = vld [vmem:[#allocation7 + $0x90] sm:$0xf]
    %v734 = vld [vmem:[#allocation7 + $0x94] sm:$0xf]
    %v735 = vld [vmem:[#allocation7 + $0x98] sm:$0xf]
    %v736 = vld [vmem:[#allocation7 + $0x9c] sm:$0xf]
    %v737 = vld [vmem:[#allocation7 + $0xa0] sm:$0xf]
    %v738 = vld [vmem:[#allocation7 + $0xa4] sm:$0xf]
    %v739 = vld [vmem:[#allocation7 + $0xa8] sm:$0xf]
    %v740 = vld [vmem:[#allocation7 + $0xac] sm:$0xf]
    %v741 = vld [vmem:[#allocation7 + $0xb0] sm:$0xf]
    %v742 = vld [vmem:[#allocation7 + $0xb4] sm:$0xf]
    %v743 = vld [vmem:[#allocation7 + $0xb8] sm:$0xf]
    %v744 = vld [vmem:[#allocation7 + $0xbc] sm:$0xf]
    %v745 = vld [vmem:[#allocation7 + $0xc0] sm:$0xf]
    %v746 = vld [vmem:[#allocation7 + $0xc4] sm:$0xf]
    %v747 = vld [vmem:[#allocation7 + $0xc8] sm:$0xf]
    %v748 = vld [vmem:[#allocation7 + $0xcc] sm:$0xf]
    %v749 = vld [vmem:[#allocation7 + $0xd0] sm:$0xf]
    %v750 = vld [vmem:[#allocation7 + $0xd4] sm:$0xf]
    %v751 = vld [vmem:[#allocation7 + $0xd8] sm:$0xf]
    %v752 = vld [vmem:[#allocation7 + $0xdc] sm:$0xf]
    %v753 = vld [vmem:[#allocation7 + $0xe0] sm:$0xf]
    %v754 = vld [vmem:[#allocation7 + $0xe4] sm:$0xf]
    %v755 = vld [vmem:[#allocation7 + $0xe8] sm:$0xf]
    %v756 = vld [vmem:[#allocation7 + $0xec] sm:$0xf]
    %v757 = vld [vmem:[#allocation7 + $0xf0] sm:$0xf]
    %v758 = vld [vmem:[#allocation7 + $0xf4] sm:$0xf]
    %v759 = vld [vmem:[#allocation7 + $0xf8] sm:$0xf]
    %v760 = vld [vmem:[#allocation7 + $0xfc] sm:$0xf]
    %v825 = vunpack.c.l.b16 %v697
    %v826 = vunpack.c.l.b16 %v698
    %v827 = vunpack.c.l.b16 %v699
    %v828 = vunpack.c.l.b16 %v700
    %v829 = vunpack.c.l.b16 %v701
    %v830 = vunpack.c.l.b16 %v702
    %v831 = vunpack.c.l.b16 %v703
    %v832 = vunpack.c.l.b16 %v704
    %v833 = vunpack.c.l.b16 %v705
    %v834 = vunpack.c.l.b16 %v706
    %v835 = vunpack.c.l.b16 %v707
    %v836 = vunpack.c.l.b16 %v708
    %v837 = vunpack.c.l.b16 %v709
    %v838 = vunpack.c.l.b16 %v710
    %v839 = vunpack.c.l.b16 %v711
    %v840 = vunpack.c.l.b16 %v712
    %v841 = vunpack.c.l.b16 %v713
    %v842 = vunpack.c.l.b16 %v714
    %v843 = vunpack.c.l.b16 %v715
    %v844 = vunpack.c.l.b16 %v716
    %v845 = vunpack.c.l.b16 %v717
    %v846 = vunpack.c.l.b16 %v718
    %v847 = vunpack.c.l.b16 %v719
    %v848 = vunpack.c.l.b16 %v720
    %v849 = vunpack.c.l.b16 %v721
    %v850 = vunpack.c.l.b16 %v722
    %v851 = vunpack.c.l.b16 %v723
    %v852 = vunpack.c.l.b16 %v724
    %v853 = vunpack.c.l.b16 %v725
    %v854 = vunpack.c.l.b16 %v726
    %v855 = vunpack.c.l.b16 %v727
    %v856 = vunpack.c.l.b16 %v728
    %v857 = vunpack.c.l.b16 %v729
    %v858 = vunpack.c.l.b16 %v730
    %v859 = vunpack.c.l.b16 %v731
    %v860 = vunpack.c.l.b16 %v732
    %v861 = vunpack.c.l.b16 %v733
    %v862 = vunpack.c.l.b16 %v734
    %v863 = vunpack.c.l.b16 %v735
    %v864 = vunpack.c.l.b16 %v736
    %v865 = vunpack.c.l.b16 %v737
    %v866 = vunpack.c.l.b16 %v738
    %v867 = vunpack.c.l.b16 %v739
    %v868 = vunpack.c.l.b16 %v740
    %v869 = vunpack.c.l.b16 %v741
    %v870 = vunpack.c.l.b16 %v742
    %v871 = vunpack.c.l.b16 %v743
    %v872 = vunpack.c.l.b16 %v744
    %v873 = vunpack.c.l.b16 %v745
    %v874 = vunpack.c.l.b16 %v746
    %v875 = vunpack.c.l.b16 %v747
    %v876 = vunpack.c.l.b16 %v748
    %v877 = vunpack.c.l.b16 %v749
    %v878 = vunpack.c.l.b16 %v750
    %v879 = vunpack.c.l.b16 %v751
    %v880 = vunpack.c.l.b16 %v752
    %v881 = vunpack.c.l.b16 %v753
    %v882 = vunpack.c.l.b16 %v754
    %v883 = vunpack.c.l.b16 %v755
    %v884 = vunpack.c.l.b16 %v756
    %v885 = vunpack.c.l.b16 %v757
    %v886 = vunpack.c.l.b16 %v758
    %v887 = vunpack.c.l.b16 %v759
    %v888 = vunpack.c.l.b16 %v760
    %v889 = vpack.c.b16 %v826, %v825
    %v890 = vpack.c.b16 %v828, %v827
    %v891 = vpack.c.b16 %v830, %v829
    %v892 = vpack.c.b16 %v832, %v831
    %v893 = vpack.c.b16 %v834, %v833
    %v894 = vpack.c.b16 %v836, %v835
    %v895 = vpack.c.b16 %v838, %v837
    %v896 = vpack.c.b16 %v840, %v839
    %v897 = vpack.c.b16 %v842, %v841
    %v898 = vpack.c.b16 %v844, %v843
    %v899 = vpack.c.b16 %v846, %v845
    %v900 = vpack.c.b16 %v848, %v847
    %v901 = vpack.c.b16 %v850, %v849
    %v902 = vpack.c.b16 %v852, %v851
    %v903 = vpack.c.b16 %v854, %v853
    %v904 = vpack.c.b16 %v856, %v855
    %v905 = vpack.c.b16 %v858, %v857
    %v906 = vpack.c.b16 %v860, %v859
    %v907 = vpack.c.b16 %v862, %v861
    %v908 = vpack.c.b16 %v864, %v863
    %v909 = vpack.c.b16 %v866, %v865
    %v910 = vpack.c.b16 %v868, %v867
    %v911 = vpack.c.b16 %v870, %v869
    %v912 = vpack.c.b16 %v872, %v871
    %v913 = vpack.c.b16 %v874, %v873
    %v914 = vpack.c.b16 %v876, %v875
    %v915 = vpack.c.b16 %v878, %v877
    %v916 = vpack.c.b16 %v880, %v879
    %v917 = vpack.c.b16 %v882, %v881
    %v918 = vpack.c.b16 %v884, %v883
    %v919 = vpack.c.b16 %v886, %v885
    %v920 = vpack.c.b16 %v888, %v887
    %953 = vmatprep.subr.bf16.mxu0 0
    %954 = vmatpush1.bf16.msra.mxu0 %v896
    %955 = vmatprep.subr.bf16.mxu0 0
    %956 = vmatpush1.bf16.msra.mxu0 %v895
    %957 = vmatprep.subr.bf16.mxu0 0
    %958 = vmatpush1.bf16.msra.mxu0 %v894
    %959 = vmatprep.subr.bf16.mxu0 0
    %960 = vmatpush1.bf16.msra.mxu0 %v893
    %961 = vmatprep.subr.bf16.mxu0 0
    %962 = vmatpush1.bf16.msra.mxu0 %v892
    %963 = vmatprep.subr.bf16.mxu0 0
    %964 = vmatpush1.bf16.msra.mxu0 %v891
    %965 = vmatprep.subr.bf16.mxu0 0
    %966 = vmatpush1.bf16.msra.mxu0 %v890
    %967 = vmatprep.subr.bf16.mxu0 0
    %968 = vmatpush1.bf16.msra.mxu0 %v889
    %969 = vmatprep.subr.bf16.mxu0 0
    %970 = vmatpush2.bf16.msra.mxu0 %v904
    %971 = vmatprep.subr.bf16.mxu0 0
    %972 = vmatpush2.bf16.msra.mxu0 %v903
    %973 = vmatprep.subr.bf16.mxu0 0
    %974 = vmatpush2.bf16.msra.mxu0 %v902
    %975 = vmatprep.subr.bf16.mxu0 0
    %976 = vmatpush2.bf16.msra.mxu0 %v901
    %977 = vmatprep.subr.bf16.mxu0 0
    %978 = vmatpush2.bf16.msra.mxu0 %v900
    %979 = vmatprep.subr.bf16.mxu0 0
    %980 = vmatpush2.bf16.msra.mxu0 %v899
    %981 = vmatprep.subr.bf16.mxu0 0
    %982 = vmatpush2.bf16.msra.mxu0 %v898
    %983 = vmatprep.subr.bf16.mxu0 0
    %984 = vmatpush2.bf16.msra.mxu0 %v897
    %985 = vmatprep.mubr.bf16.mxu0 %v694
    %986 = vmatmul.mubr.bf16.gmra.mxu0 %v693
    %v987 = vpop.f32.mrf.mxu0
    %v988 = vadd.f32 0.0, %v987
    %v989 = vpop.f32.mrf.mxu0
    %v990 = vpop.f32.mrf.mxu0
    %v991 = vadd.f32 0.0, %v990
    %v992 = vpop.f32.mrf.mxu0
    %993 = vdwg.mxu0
    %994 = vmatprep.subr.bf16.mxu0 0
    %995 = vmatpush1.bf16.msra.mxu0 %v912
    %996 = vmatprep.subr.bf16.mxu0 0
    %997 = vmatpush1.bf16.msra.mxu0 %v911
    %998 = vmatprep.subr.bf16.mxu0 0
    %999 = vmatpush1.bf16.msra.mxu0 %v910
    %1000 = vmatprep.subr.bf16.mxu0 0
    %1001 = vmatpush1.bf16.msra.mxu0 %v909
    %1002 = vmatprep.subr.bf16.mxu0 0
    %1003 = vmatpush1.bf16.msra.mxu0 %v908
    %1004 = vmatprep.subr.bf16.mxu0 0
    %1005 = vmatpush1.bf16.msra.mxu0 %v907
    %1006 = vmatprep.subr.bf16.mxu0 0
    %1007 = vmatpush1.bf16.msra.mxu0 %v906
    %1008 = vmatprep.subr.bf16.mxu0 0
    %1009 = vmatpush1.bf16.msra.mxu0 %v905
    %1010 = vmatprep.subr.bf16.mxu0 0
    %1011 = vmatpush2.bf16.msra.mxu0 %v920
    %1012 = vmatprep.subr.bf16.mxu0 0
    %1013 = vmatpush2.bf16.msra.mxu0 %v919
    %1014 = vmatprep.subr.bf16.mxu0 0
    %1015 = vmatpush2.bf16.msra.mxu0 %v918
    %1016 = vmatprep.subr.bf16.mxu0 0
    %1017 = vmatpush2.bf16.msra.mxu0 %v917
    %1018 = vmatprep.subr.bf16.mxu0 0
    %1019 = vmatpush2.bf16.msra.mxu0 %v916
    %1020 = vmatprep.subr.bf16.mxu0 0
    %1021 = vmatpush2.bf16.msra.mxu0 %v915
    %1022 = vmatprep.subr.bf16.mxu0 0
    %1023 = vmatpush2.bf16.msra.mxu0 %v914
    %1024 = vmatprep.subr.bf16.mxu0 0
    %1025 = vmatpush2.bf16.msra.mxu0 %v913
    %1026 = vmatprep.mubr.bf16.mxu0 %v696
    %1027 = vmatmul.mubr.bf16.gmra.mxu0 %v695
    %v1028 = vpop.f32.mrf.mxu0
    %v1029 = vadd.f32 %v988, %v1028
    %v1030 = vpop.f32.mrf.mxu0
    %v1031 = vpop.f32.mrf.mxu0
    %v1032 = vadd.f32 %v991, %v1031
    %v1033 = vpop.f32.mrf.mxu0
    %1034 = vdwg.mxu0
    %v1035 = vadd.f32 %v691, %v1029
    %v1036 = vadd.f32 %v692, %v1032
    %1037 = vst [vmem:[#allocation8] sm:$0xff] %v1035
    %1038 = vst [vmem:[#allocation8 + $0x8] sm:$0xff] %v1036
    // Predicated region
    $region30: #{tpu_custom_call.1} parent=1 // pred_check
      _
    $region31: #{tpu_custom_call.1} parent=1 // pred_check_branch
      %1040 = sbr.rel (0) target = $region33
    $region32: #{tpu_custom_call.1} parent=1 // pred_region
      %s1042 = ssub.s32 256, 256
      %1043 = vsyncadd [#allocation4], %s1042
      %s1044 = sshll.u32 [#allocation8], 4
      %s1045 = int_to_ptr.vmem [resolvable:$true] %s1044
      %1050 = dma.vmem_to_hbm [thread:$0]  %s1045, 256, %s3, [#allocation4], 128, 128, 8
    $region33: #{tpu_custom_call.1} parent=1 // pred_fallthru
      _
    // Predicated region
    $region34: #{tpu_custom_call.1} parent=1 // pred_check
      _
    $region35: #{tpu_custom_call.1} parent=1 // pred_check_branch
      %1052 = sbr.rel (0) target = $region37
    $region36: #{tpu_custom_call.1} parent=1 // pred_region
      %1053 = dma.done [#allocation4], 256
    $region37: #{tpu_custom_call.1} parent=1 // pred_fallthru
      _
    %1054 = vsyncpa [#allocation3], 1
    %1055 = vsyncpa [#allocation6], 1
    %1056 = vsyncpa [#allocation4], 1

</llo_original>
